<compile_context>
chip_gen: v5e
topology: v5e:2x2
jax: 0.10.0
libtpu: 0.0.40
codegen_flags: <defaults>
</compile_context>

<pallas_src>
import functools

import jax
import jax.numpy as jnp
from jax.experimental import pallas as pl
from jax.experimental.pallas import tpu as pltpu

NUM_MODELS = 4
LANE = 128
SUBLANE = 8


def _round_up(x, m):
    return (x + m - 1) // m * m


def _make_kernel(cp, models_per_group):
    """Build the ensemble matmul kernel for a given class pad / group split."""

    def kernel(sm_ref, x_ref, w_ref, o_ref, acc_ref):
        # sm_ref : (1, 4)           f32,  SMEM  (softmax'd ensemble weights)
        # x_ref  : (tm, tk)         bf16, VMEM  (flattened-input tile)
        # w_ref  : (tk, mpg*Cp)     bf16, VMEM  (this group's packed weight K-slab)
        # o_ref  : (tm, Cp)         f32,  VMEM  (this group's partial ensemble out)
        # acc_ref: (tm, mpg*Cp)     f32,  VMEM scratch accumulator
        g = pl.program_id(0)
        ki = pl.program_id(2)
        nk = pl.num_programs(2)

        contrib = jnp.dot(x_ref[...], w_ref[...],
                          preferred_element_type=jnp.float32)

        @pl.when(ki == 0)
        def _init():
            acc_ref[...] = contrib              # no zero-then-add pass

        @pl.when(ki != 0)
        def _accumulate():
            acc_ref[...] += contrib

        @pl.when(ki == nk - 1)
        def _finalize():
            acc = acc_ref[...]
            out = sm_ref[0, g * models_per_group] * acc[:, 0:cp]
            for j in range(1, models_per_group):
                out = out + (sm_ref[0, g * models_per_group + j]
                             * acc[:, j * cp:(j + 1) * cp])
            o_ref[...] = out.astype(o_ref.dtype)

    return kernel


def prepare_ensemble_params(w_stack, b_stack, *, tk=2048):
    """One-time (init) padding / casting / packing of the 4 linear heads.

    Returns (w_packed, b_pad, tk_eff):
      w_packed: (Dp, 4*Cp) bfloat16, heads packed along the class (N) axis
      b_pad   : (4, Cp)    float32
      tk_eff  : K tile the packed layout was padded to (divides Dp)
    """
    nm, d, c = w_stack.shape
    assert nm == NUM_MODELS
    cp = _round_up(c, LANE)
    tk_eff = min(tk, _round_up(d, LANE))
    dp = _round_up(d, tk_eff)

    w_packed = jnp.zeros((dp, NUM_MODELS * cp), jnp.bfloat16)
    for k in range(NUM_MODELS):
        w_packed = w_packed.at[:d, k * cp:k * cp + c].set(
            w_stack[k].astype(jnp.bfloat16))
    b_pad = jnp.zeros((NUM_MODELS, cp), jnp.float32).at[:, :c].set(
        b_stack.astype(jnp.float32))
    return w_packed, b_pad, tk_eff


@functools.partial(jax.jit,
                   static_argnames=("tk", "num_classes", "tm_max", "num_groups"))
def adaptive_ensemble(x_nchw, w_packed, b_pad, ens_logits, *, tk, num_classes,
                      tm_max=128, num_groups=None):
    """Forward pass of AdaptiveEnsemble with linear sub-model heads."""
    b = x_nchw.shape[0]
    x_flat = x_nchw.reshape(b, -1)                    # torch's x.view(B, -1)
    d = x_flat.shape[1]
    dp, n_tot = w_packed.shape
    cp = n_tot // NUM_MODELS
    assert d <= dp and dp % tk == 0 and num_classes <= cp

    tm = min(_round_up(b, SUBLANE), tm_max)
    bp = _round_up(b, tm)
    n_batch_tiles = bp // tm
    nk = dp // tk

    if num_groups is None:
        # Single batch tile (small-batch inference): split the 4 heads into 2
        # parallel groups so v7x's second TensorCore gets work; otherwise keep
        # one full-width (N = 4*Cp) group per batch tile.
        num_groups = 2 if n_batch_tiles == 1 else 1
    mpg = NUM_MODELS // num_groups

    # F.softmax(self.weights, dim=0) -- 4 scalars, computed outside the hot loop.
    sm = jax.nn.softmax(ens_logits.reshape(-1).astype(jnp.float32))
    sm2 = sm.reshape(1, NUM_MODELS)
    b_eff = sm @ b_pad                                # (Cp,) softmax-folded bias

    # Activation pad/cast is per call but tiny relative to the weight stream.
    x_bf16 = x_flat.astype(jnp.bfloat16)
    if (bp, dp) != (b, d):
        x_p = jnp.zeros((bp, dp), jnp.bfloat16).at[:b, :d].set(x_bf16)
    else:
        x_p = x_bf16

    # Deepen buffering on the weight stream only when there are enough K steps.
    w_spec_kwargs = {}
    if nk >= 3:
        w_spec_kwargs["pipeline_mode"] = pl.Buffered(3)
    w_bufs = 3 if nk >= 3 else 2

    vmem_need = (w_bufs * tk * mpg * cp * 2        # weight buffers (bf16)
                 + 2 * tm * tk * 2                 # x double buffer (bf16)
                 + 2 * tm * cp * 4                 # output double buffer (f32)
                 + tm * mpg * cp * 4)              # accumulator scratch (f32)
    vmem_limit = min(56 * 1024 * 1024,
                     max(16 * 1024 * 1024, int(vmem_need * 1.5)))

    cost = pl.CostEstimate(
        flops=(2 * bp * dp * NUM_MODELS * cp            # MXU matmuls
               + 2 * num_groups * bp * mpg * cp),       # epilogue weighted sum
        transcendentals=0,
        bytes_accessed=(num_groups * x_p.size * 2               # x per group
                        + n_batch_tiles * w_packed.size * 2     # w per batch tile
                        + num_groups * bp * cp * 4),            # output
    )

    grid = (num_groups, n_batch_tiles, nk)

    out = pl.pallas_call(
        _make_kernel(cp, mpg),
        out_shape=jax.ShapeDtypeStruct((num_groups, bp, cp), jnp.float32),
        grid=grid,
        in_specs=[
            pl.BlockSpec((1, NUM_MODELS), lambda g, bi, ki: (0, 0),
                         memory_space=pltpu.MemorySpace.SMEM),
            pl.BlockSpec((tm, tk), lambda g, bi, ki: (bi, ki)),
            pl.BlockSpec((tk, mpg * cp), lambda g, bi, ki: (ki, g),
                         **w_spec_kwargs),
        ],
        out_specs=pl.BlockSpec((None, tm, cp), lambda g, bi, ki: (g, bi, 0)),
        scratch_shapes=[pltpu.VMEM((tm, mpg * cp), jnp.float32)],
        compiler_params=pltpu.CompilerParams(
            dimension_semantics=("parallel", "parallel", "arbitrary"),
            vmem_limit_bytes=vmem_limit,
        ),
        cost_estimate=cost,
    )(sm2, x_p, w_packed)

    ens = out.sum(axis=0) if num_groups > 1 else out[0]
    ens = ens + b_eff[None, :]
    return ens[:b, :num_classes]


def _reference(x_nchw, w_stack, b_stack, ens_logits):
    b = x_nchw.shape[0]
    xf = x_nchw.reshape(b, -1).astype(jnp.float32)
    sm = jax.nn.softmax(ens_logits.reshape(-1).astype(jnp.float32))
    ys = [xf @ w_stack[k].astype(jnp.float32) + b_stack[k].astype(jnp.float32)
          for k in range(NUM_MODELS)]
    return sum(sm[k] * ys[k] for k in range(NUM_MODELS))


if __name__ == "__main__":
    key = jax.random.PRNGKey(0)
    B, Cin, H, W = 2, 4, 16, 16
    D = Cin * H * W                      # 1024
    NUM_CLASSES = 16

    k_x, k_w, k_b = jax.random.split(key, 3)
    x = jax.random.normal(k_x, (B, Cin, H, W), dtype=jnp.float32)
    w_stack = jax.random.normal(
        k_w, (NUM_MODELS, D, NUM_CLASSES), dtype=jnp.float32) * 0.02
    b_stack = jax.random.normal(
        k_b, (NUM_MODELS, NUM_CLASSES), dtype=jnp.float32) * 0.01
    # nn.Parameter(torch.tensor([0.3, 0.2, 0.3, 0.2]))
    ens_logits = jnp.array([0.3, 0.2, 0.3, 0.2], dtype=jnp.float32)

    # One-time parameter preparation (pad / cast / pack) -- cached across calls.
    w_packed, b_pad, tk_eff = prepare_ensemble_params(w_stack, b_stack, tk=2048)
    w_packed, b_pad = jax.block_until_ready((w_packed, b_pad))

    out = adaptive_ensemble(x, w_packed, b_pad, ens_logits,
                            tk=tk_eff, num_classes=NUM_CLASSES)
    out = jax.block_until_ready(out)

    ref = _reference(x, w_stack, b_stack, ens_logits)
    assert out.shape == (B, NUM_CLASSES)
    # bf16 inputs / f32 accumulation -> compare against the f32 reference with
    # a bf16-appropriate tolerance.
    assert jnp.allclose(out, ref, atol=5e-2, rtol=5e-2), "mismatch vs reference"
    print("KERNEL_OK")
</pallas_src>

<mosaic_0001>
module attributes {stable_mosaic.version = 11 : i64} {
  func.func @kernel(%arg0: i32, %arg1: i32, %arg2: i32, %arg3: memref<1x4xf32, #tpu.memory_space<smem>>, %arg4: memref<8x1024xbf16, #tpu.memory_space<vmem>>, %arg5: memref<1024x256xbf16, #tpu.memory_space<vmem>>, %arg6: memref<1x8x128xf32, #tpu.memory_space<vmem>>, %arg7: memref<8x256xf32, #tpu.memory_space<vmem>>) attributes {dimension_semantics = [#tpu.dimension_semantics<parallel>, #tpu.dimension_semantics<parallel>, #tpu.dimension_semantics<arbitrary>], iteration_bounds = array<i64: 2, 1, 1>, scalar_prefetch = 0 : i64, scratch_operands = 1 : i64, tpu.core_type = #tpu.core_type<tc>, window_params = [{transform_indices = @transform_0, window_bounds = array<i64: 1, 4>}, {transform_indices = @transform_1, window_bounds = array<i64: 8, 1024>}, {transform_indices = @transform_2, window_bounds = array<i64: 1024, 256>}, {transform_indices = @transform_3, window_bounds = array<i64: 1, 8, 128>}]} {
    %c0 = arith.constant 0 : index
    %c0_0 = arith.constant 0 : index
    %0 = vector.load %arg4[%c0, %c0_0] : memref<8x1024xbf16, #tpu.memory_space<vmem>>, vector<8x1024xbf16>
    %c0_1 = arith.constant 0 : index
    %c0_2 = arith.constant 0 : index
    %1 = vector.load %arg5[%c0_1, %c0_2] : memref<1024x256xbf16, #tpu.memory_space<vmem>>, vector<1024x256xbf16>
    %cst = arith.constant dense<0.000000e+00> : vector<8x256xf32>
    %2 = tpu.matmul %0, %1, %cst {dimension_numbers = #tpu.dot_dimension_numbers<[1], [0], [0], [1], [0, 0, 1, 1], [], []>} : vector<8x1024xbf16>, vector<1024x256xbf16>, vector<8x256xf32> -> vector<8x256xf32>
    %c0_i32 = arith.constant 0 : i32
    %3 = arith.cmpi eq, %arg2, %c0_i32 : i32
    %4 = arith.extui %3 : i1 to i32
    %c0_i32_3 = arith.constant 0 : i32
    %5 = arith.cmpi ne, %4, %c0_i32_3 : i32
    scf.if %5 {
      %c0_8 = arith.constant 0 : index
      %c0_9 = arith.constant 0 : index
      %12 = vector.load %arg7[%c0_8, %c0_9] : memref<8x256xf32, #tpu.memory_space<vmem>>, vector<8x256xf32>
      tpu.vector_store %arg7[%c0_8, %c0_9], %2 {strides = array<i32>} : memref<8x256xf32, #tpu.memory_space<vmem>>, vector<8x256xf32>,
    } else {
    }
    %c0_i32_4 = arith.constant 0 : i32
    %6 = arith.cmpi ne, %arg2, %c0_i32_4 : i32
    %7 = arith.extui %6 : i1 to i32
    %c0_i32_5 = arith.constant 0 : i32
    %8 = arith.cmpi ne, %7, %c0_i32_5 : i32
    scf.if %8 {
      %c0_8 = arith.constant 0 : index
      %c0_9 = arith.constant 0 : index
      %12 = vector.load %arg7[%c0_8, %c0_9] : memref<8x256xf32, #tpu.memory_space<vmem>>, vector<8x256xf32>
      %13 = arith.addf %12, %2 : vector<8x256xf32>
      %c0_10 = arith.constant 0 : index
      %c0_11 = arith.constant 0 : index
      %14 = vector.load %arg7[%c0_10, %c0_11] : memref<8x256xf32, #tpu.memory_space<vmem>>, vector<8x256xf32>
      tpu.vector_store %arg7[%c0_10, %c0_11], %13 {strides = array<i32>} : memref<8x256xf32, #tpu.memory_space<vmem>>, vector<8x256xf32>,
    } else {
    }
    %c0_i32_6 = arith.constant 0 : i32
    %9 = arith.cmpi eq, %arg2, %c0_i32_6 : i32
    %10 = arith.extui %9 : i1 to i32
    %c0_i32_7 = arith.constant 0 : i32
    %11 = arith.cmpi ne, %10, %c0_i32_7 : i32
    scf.if %11 {
      %c0_8 = arith.constant 0 : index
      %c0_9 = arith.constant 0 : index
      %12 = vector.load %arg7[%c0_8, %c0_9] : memref<8x256xf32, #tpu.memory_space<vmem>>, vector<8x256xf32>
      %c2_i32 = arith.constant 2 : i32
      %13 = arith.muli %arg0, %c2_i32 : i32
      %c0_10 = arith.constant 0 : index
      %14 = arith.index_cast %13 : i32 to index
      %15 = memref.load %arg3[%c0_10, %14] : memref<1x4xf32, #tpu.memory_space<smem>>
      %16 = vector.extract_strided_slice %12 {offsets = [0, 0], sizes = [8, 128], strides = [1, 1]} : vector<8x256xf32> to vector<8x128xf32>
      %17 = vector.broadcast %15 : f32 to vector<8x128xf32>
      %18 = arith.mulf %17, %16 : vector<8x128xf32>
      %c2_i32_11 = arith.constant 2 : i32
      %19 = arith.muli %arg0, %c2_i32_11 : i32
      %c1_i32 = arith.constant 1 : i32
      %20 = arith.addi %19, %c1_i32 : i32
      %c0_12 = arith.constant 0 : index
      %21 = arith.index_cast %20 : i32 to index
      %22 = memref.load %arg3[%c0_12, %21] : memref<1x4xf32, #tpu.memory_space<smem>>
      %23 = vector.extract_strided_slice %12 {offsets = [0, 128], sizes = [8, 128], strides = [1, 1]} : vector<8x256xf32> to vector<8x128xf32>
      %24 = vector.broadcast %22 : f32 to vector<8x128xf32>
      %25 = arith.mulf %24, %23 : vector<8x128xf32>
      %26 = arith.addf %18, %25 : vector<8x128xf32>
      %c0_13 = arith.constant 0 : index
      %c0_14 = arith.constant 0 : index
      %c0_15 = arith.constant 0 : index
      %27 = vector.load %arg6[%c0_13, %c0_14, %c0_15] : memref<1x8x128xf32, #tpu.memory_space<vmem>>, vector<1x8x128xf32>
      %28 = vector.shape_cast %27 : vector<1x8x128xf32> to vector<8x128xf32>
      %29 = vector.shape_cast %26 : vector<8x128xf32> to vector<1x8x128xf32>
      tpu.vector_store %arg6[%c0_13, %c0_14, %c0_15], %29 {strides = array<i32>} : memref<1x8x128xf32, #tpu.memory_space<vmem>>, vector<1x8x128xf32>,
    } else {
    }
    return
  }
  func.func @transform_0(%arg0: i32, %arg1: i32, %arg2: i32) -> (i32, i32) {
    %c0_i32 = arith.constant 0 : i32
    %c0_i32_0 = arith.constant 0 : i32
    %c0_i32_1 = arith.constant 0 : i32
    return %c0_i32, %c0_i32_0 : i32, i32
  }
  func.func @transform_1(%arg0: i32, %arg1: i32, %arg2: i32) -> (i32, i32) {
    %c0_i32 = arith.constant 0 : i32
    return %arg1, %arg2 : i32, i32
  }
  func.func @transform_2(%arg0: i32, %arg1: i32, %arg2: i32) -> (i32, i32) {
    %c0_i32 = arith.constant 0 : i32
    return %arg2, %arg0 : i32, i32
  }
  func.func @transform_3(%arg0: i32, %arg1: i32, %arg2: i32) -> (i32, i32, i32) {
    %c0_i32 = arith.constant 0 : i32
    %c0_i32_0 = arith.constant 0 : i32
    return %arg0, %arg1, %c0_i32 : i32, i32, i32
  }
}

</mosaic_0001>

<llo_original>
// kernel: adaptive_ensemble.1
$region0: #{adaptive_ensemble.1}
  #allocation0 [shape = 'u32[]', space=smem, size = 0x4, offset = 0x4, fixed_abs, tag = 'smem constant byte address 0x4 - core index']
  #allocation1 [shape = 'u32[72,128]{1,0:T(1,128)}', space=vmem, size = 0x9000, scoped, tag = 'internal scratch']
  #allocation2 [shape = 'f32[8,256]{1,0:T(8,128)}', space=vmem, size = 0x2000, scoped, tag = 'scratch operand']
  %s0 = inlined_call_operand.vmem [shape: f32[1,4], index: 0, kind: input, shape index: {}]
  %s1 = inlined_call_operand.vmem [shape: bf16[8,1024], index: 1, kind: input, shape index: {}]
  %s2 = inlined_call_operand.hbm [shape: bf16[1024,512], index: 2, kind: input, shape index: {}]
  %s3 = inlined_call_operand.vmem [shape: f32[2,8,128], index: 3, kind: output, shape index: {}]
  %s4 = sld [smem:[#allocation0]]
  $region65: #{adaptive_ensemble.1} parent=0
    _
  %s6 = ssub.s32 1, %s4
  %s7 = scalar_select 0, %s6, %s4
  $region1: #{adaptive_ensemble.1} parent=0
    #allocation3 [shape = 'u8[512]{0}', space=smem, size = 0x200, scoped, tag = 'input window, operand 0, single buffered']
    #allocation4 [shape = 's32[2]{0}', space=sflag, size = 0x8, scoped, tag = 'scoped memory for adaptive_ensemble.1']
    #allocation5 [shape = 's32[2]{0}', space=sflag, size = 0x8, scoped, tag = 'scoped memory for adaptive_ensemble.1']
    #allocation6 [shape = 'u8[1048576]{0}', space=vmem, size = 0x100000, scoped, tag = 'input window, operand 2']
    %8 = vsyncpa [#allocation5], 0
    %9 = vsyncpa [#allocation4], 0
    %s10 = scalar_lea.sflag [#allocation4], 1
    %11 = vsyncpa %s10, 0
    loop: start=0, step=1, limit=4
    $region2: #{adaptive_ensemble.1} parent=1 // loop_pre_header
      _
    $region3: #{adaptive_ensemble.1} parent=1 // loop_header
      %s13 = sphi 0, %s17
      %p14 = scmp.ge.s32.totalorder %s13, 4
      %s20 = sphi 0, %s39
      %s21 = sphi 0, %s35
      %s22 = sphi 0, %s31
      %s23 = sphi 0, %s20
      %s24 = sphi 0, %s21
      %s25 = sphi 0, %s22
      %s26 = sphi 0, %s23
      %s27 = sphi 0, %s24
      %s28 = sphi 0, %s25
      %s40 = sphi 0, %s40
      %s42 = sphi 0, %s40
      %s43 = sphi 0, %s42
      %s57 = sphi 0, %s43
      %s65 = sphi 0, %s67
      %s68 = sphi 0, %s65
      %s69 = sphi 0, %s68
      %s85 = sphi 0, %s69
      %s93 = sphi 0, %s95
      %s96 = sphi 0, %s93
      %s97 = sphi 0, %s96
      %s113 = sphi 0, %s97
      %s121 = sphi 0, %s123
      %s124 = sphi 0, %s121
      %s125 = sphi 0, %s124
      %s141 = sphi 0, %s125
    $region4: #{adaptive_ensemble.1} parent=1 // loop_header_branch
      %16 = sbr.rel (%p14) target = $region8
    $region5: #{adaptive_ensemble.1} parent=1 // loop_body
      %s18 = ssub.s32 %s13, 1
      %s19 = ssub.s32 %s13, 2
      %s29 = sadd.s32 1, %s22
      %p30 = scmp.ge.s32.totalorder %s29, 1
      %s31 = scalar_select %p30, 0, %s29
      %s32 = sadd.s32 1, %s21
      %s33 = scalar_select %p30, %s32, %s21
      %p34 = scmp.ge.s32.totalorder %s33, 1
      %s35 = scalar_select %p34, 0, %s33
      %s36 = sadd.s32 1, %s20
      %s37 = scalar_select %p34, %s36, %s20
      %p38 = scmp.ge.s32.totalorder %s37, 2
      %s39 = scalar_select %p38, 0, %s37
      %s41 = sadd.s32 %s40, 1
      %p44 = scmp.eq.s32.totalorder %s13, 1
      %p45 = scmp.ne.s32.totalorder %s40, %s42
      %p46 = scmp.eq.s32.totalorder %s13, 0
      %p47 = por %p45, %p46
      %p48 = scmp.ne.s32.totalorder %s40, %s42
      %p49 = scmp.eq.s32.totalorder %s18, 1
      %p50 = por %p48, %p49
      %p51 = scmp.ne.s32.totalorder %s42, %s43
      %p52 = scmp.eq.s32.totalorder %s18, 0
      %p53 = por %p51, %p52
      %p54 = scmp.ne.s32.totalorder %s42, %s43
      %p55 = scmp.eq.s32.totalorder %s19, 1
      %p56 = por %p54, %p55
      %p58 = scmp.ne.s32.totalorder %s43, %s57
      %p59 = scmp.eq.s32.totalorder %s19, 0
      %p60 = por %p58, %p59
      %s61 = ssub.s32 %s21, %s35
      %s62 = ssub.s32 %s22, %s31
      %s63 = sor.u32 %s61, %s62
      %p64 = scmp.eq.s32.totalorder %s63, 0
      %s66 = sadd.s32 %s65, 1
      %s67 = scalar_select %p64, %s65, %s66
      %p70 = pneg %p64
      %p71 = scmp.eq.s32.totalorder %s13, 1
      %p72 = por %p70, %p71
      %p73 = scmp.ne.s32.totalorder %s65, %s68
      %p74 = scmp.eq.s32.totalorder %s13, 0
      %p75 = por %p73, %p74
      %p76 = scmp.ne.s32.totalorder %s65, %s68
      %p77 = scmp.eq.s32.totalorder %s18, 1
      %p78 = por %p76, %p77
      %p79 = scmp.ne.s32.totalorder %s68, %s69
      %p80 = scmp.eq.s32.totalorder %s18, 0
      %p81 = por %p79, %p80
      %p82 = scmp.ne.s32.totalorder %s68, %s69
      %p83 = scmp.eq.s32.totalorder %s19, 1
      %p84 = por %p82, %p83
      %p86 = scmp.ne.s32.totalorder %s69, %s85
      %p87 = scmp.eq.s32.totalorder %s19, 0
      %p88 = por %p86, %p87
      %s89 = ssub.s32 %s22, %s31
      %s90 = ssub.s32 %s20, %s39
      %s91 = sor.u32 %s89, %s90
      %p92 = scmp.eq.s32.totalorder %s91, 0
      %s94 = sadd.s32 %s93, 1
      %s95 = scalar_select %p92, %s93, %s94
      %p98 = pneg %p92
      %p99 = scmp.eq.s32.totalorder %s13, 1
      %p100 = por %p98, %p99
      %p101 = scmp.ne.s32.totalorder %s93, %s96
      %p102 = scmp.eq.s32.totalorder %s13, 0
      %p103 = por %p101, %p102
      %p104 = scmp.ne.s32.totalorder %s93, %s96
      %p105 = scmp.eq.s32.totalorder %s18, 1
      %p106 = por %p104, %p105
      %p107 = scmp.ne.s32.totalorder %s96, %s97
      %p108 = scmp.eq.s32.totalorder %s18, 0
      %p109 = por %p107, %p108
      %p110 = scmp.ne.s32.totalorder %s96, %s97
      %p111 = scmp.eq.s32.totalorder %s19, 1
      %p112 = por %p110, %p111
      %p114 = scmp.ne.s32.totalorder %s97, %s113
      %p115 = scmp.eq.s32.totalorder %s19, 0
      %p116 = por %p114, %p115
      %s117 = ssub.s32 %s20, %s39
      %s118 = ssub.s32 %s21, %s35
      %s119 = sor.u32 %s117, %s118
      %p120 = scmp.eq.s32.totalorder %s119, 0
      %s122 = sadd.s32 %s121, 1
      %s123 = scalar_select %p120, %s121, %s122
      %p126 = pneg %p120
      %p127 = scmp.eq.s32.totalorder %s13, 1
      %p128 = por %p126, %p127
      %p129 = scmp.ne.s32.totalorder %s121, %s124
      %p130 = scmp.eq.s32.totalorder %s13, 0
      %p131 = por %p129, %p130
      %p132 = scmp.ne.s32.totalorder %s121, %s124
      %p133 = scmp.eq.s32.totalorder %s18, 1
      %p134 = por %p132, %p133
      %p135 = scmp.ne.s32.totalorder %s124, %s125
      %p136 = scmp.eq.s32.totalorder %s18, 0
      %p137 = por %p135, %p136
      %p138 = scmp.ne.s32.totalorder %s124, %s125
      %p139 = scmp.eq.s32.totalorder %s19, 1
      %p140 = por %p138, %p139
      %p142 = scmp.ne.s32.totalorder %s125, %s141
      %p143 = scmp.eq.s32.totalorder %s19, 0
      %p144 = por %p142, %p143
      %p145 = scmp.le.s32.totalorder 1, %s13
      %p146 = scmp.lt.s32.totalorder %s13, 3
      %p147 = pnand %p145, %p146
      %p148 = pneg %p147
      // Predicated region
      $region9: #{adaptive_ensemble.1} parent=5 // pred_check
        _
      $region10: #{adaptive_ensemble.1} parent=5 // pred_check_branch
        %150 = sbr.rel (%p147) target = $region12
      $region11: #{adaptive_ensemble.1} parent=5 // pred_region
        %s151 = ssub.s32 %s13, 1
        // Predicated region
        $region13: #{adaptive_ensemble.1} parent=11 // pred_check
          %p152 = pneg %p53
        $region14: #{adaptive_ensemble.1} parent=11 // pred_check_branch
          %154 = sbr.rel (%p152) target = $region16
        $region15: #{adaptive_ensemble.1} parent=11 // pred_region
          %156 = vsyncadd [#allocation5], 0
          %s158 = sshll.u32 %s0, 4
          %s159 = int_to_ptr.vmem [resolvable:$true] %s158
          %161 = dma.vmem_to_smem %s159, 16, [#allocation3], [#allocation5]
        $region16: #{adaptive_ensemble.1} parent=11 // pred_fallthru
          _
        // Predicated region
        $region17: #{adaptive_ensemble.1} parent=11 // pred_check
          %p162 = pneg %p81
        $region18: #{adaptive_ensemble.1} parent=11 // pred_check_branch
          %164 = sbr.rel (%p162) target = $region20
        $region19: #{adaptive_ensemble.1} parent=11 // pred_region
          %s165 = smul.u32 8, %s25
          %p166 = scmp.lt.s32.totalorder %s24, 0
          %s167 = scalar_select %p166, %s24, 0
          %p168 = scmp.lt.s32.totalorder %s165, 7
          %s169 = scalar_select %p168, %s165, 7
          %s170 = smul.addr %s167, 8
          %s171 = sadd.s32 %s169, %s170
          %s172 = smul.addr %s171, 4
          %s173 = scalar_lea.vmem %s1, %s172
          %s174 = smul.u32 8, %s25
        $region20: #{adaptive_ensemble.1} parent=11 // pred_fallthru
          _
      $region12: #{adaptive_ensemble.1} parent=5 // pred_fallthru
        _
      %p175 = scmp.lt.s32.totalorder %s13, 2
      // Predicated region
      $region21: #{adaptive_ensemble.1} parent=5 // pred_check
        %p176 = pneg %p175
      $region22: #{adaptive_ensemble.1} parent=5 // pred_check_branch
        %178 = sbr.rel (%p176) target = $region24
      $region23: #{adaptive_ensemble.1} parent=5 // pred_region
        // Predicated region
        $region25: #{adaptive_ensemble.1} parent=23 // pred_check
          %p179 = pneg %p103
        $region26: #{adaptive_ensemble.1} parent=23 // pred_check_branch
          %181 = sbr.rel (%p179) target = $region28
        $region27: #{adaptive_ensemble.1} parent=23 // pred_region
          %s182 = sand.u32 %s93, 1
          %s183 = scalar_lea.sflag [#allocation4], %s182
          %s184 = sand.u32 %s93, 1
          %s185 = smul.addr %s184, 1024
          %s186 = scalar_lea.vmem [#allocation6], %s185
          %s187 = smul.u32 128, %s22
          %s188 = smul.u32 2, %s20
          %190 = vsyncadd %s183, 0
          %s191 = smul.addr %s187, 4
          %s192 = sadd.s32 %s188, %s191
          %s193 = smul.addr %s192, 4
          %s194 = scalar_lea.hbm %s2, %s193
          %s195 = sshll.u32 %s194, 4
          %s196 = int_to_ptr.hbm [resolvable:$true] %s195
          %s197 = sshll.u32 %s186, 4
          %s198 = int_to_ptr.vmem [resolvable:$true] %s197
          %203 = dma.hbm_to_vmem [thread:$0]  %s196, 16384, %s198, %s183, 256, 128, 8
        $region28: #{adaptive_ensemble.1} parent=23 // pred_fallthru
          _
      $region24: #{adaptive_ensemble.1} parent=5 // pred_fallthru
        _
      %p204 = scmp.le.s32.totalorder 1, %s13
      %p205 = scmp.lt.s32.totalorder %s13, 3
      %p206 = pnand %p204, %p205
      %p207 = pneg %p206
      // Predicated region
      $region29: #{adaptive_ensemble.1} parent=5 // pred_check
        _
      $region30: #{adaptive_ensemble.1} parent=5 // pred_check_branch
        %209 = sbr.rel (%p206) target = $region32
      $region31: #{adaptive_ensemble.1} parent=5 // pred_region
        %s210 = ssub.s32 %s13, 1
        // Predicated region
        $region33: #{adaptive_ensemble.1} parent=31 // pred_check
          %p211 = pneg %p53
        $region34: #{adaptive_ensemble.1} parent=31 // pred_check_branch
          %213 = sbr.rel (%p211) target = $region36
        $region35: #{adaptive_ensemble.1} parent=31 // pred_region
          %215 = dma.done [#allocation5], 16
        $region36: #{adaptive_ensemble.1} parent=31 // pred_fallthru
          _
        %s216 = sand.u32 %s96, 1
        %s217 = scalar_lea.sflag [#allocation4], %s216
        %s218 = sand.u32 %s96, 1
        %s219 = smul.addr %s218, 1024
        %s220 = scalar_lea.vmem [#allocation6], %s219
        // Predicated region
        $region37: #{adaptive_ensemble.1} parent=31 // pred_check
          %p221 = pneg %p109
        $region38: #{adaptive_ensemble.1} parent=31 // pred_check_branch
          %223 = sbr.rel (%p221) target = $region40
        $region39: #{adaptive_ensemble.1} parent=31 // pred_region
          %225 = dma.done %s217, 16384
        $region40: #{adaptive_ensemble.1} parent=31 // pred_fallthru
          _
        %226 = sfence
        %p227 = pneg %p53
        %p228 = pneg %p50
        %s229 = smul.u32 8, %s25
        %p230 = scmp.lt.s32.totalorder %s24, 0
        %s231 = scalar_select %p230, %s24, 0
        %p232 = scmp.lt.s32.totalorder %s229, 7
        %s233 = scalar_select %p232, %s229, 7
        %s234 = smul.addr %s231, 8
        %s235 = sadd.s32 %s233, %s234
        %s236 = smul.addr %s235, 4
        %s237 = scalar_lea.vmem %s1, %s236
        %p238 = pneg %p81
        %p239 = pneg %p78
        %s240 = sand.u32 %s96, 1
        %s241 = scalar_lea.sflag [#allocation4], %s240
        %s242 = sand.u32 %s96, 1
        %s243 = smul.addr %s242, 1024
        %s244 = scalar_lea.vmem [#allocation6], %s243
        %p245 = pneg %p109
        %p246 = pneg %p106
        %p247 = pneg %p137
        %p248 = pneg %p134
        %p249 = scmp.lt.s32.totalorder %s23, 1
        %s250 = scalar_select %p249, %s23, 1
        %p251 = scmp.lt.s32.totalorder %s24, 0
        %s252 = scalar_select %p251, %s24, 0
        %s253 = sadd.s32 %s252, %s250
        %s254 = smul.addr %s253, 8
        %s255 = scalar_lea.vmem %s3, %s254
        %s256 = smul.u32 8, %s25
        %p257 = scmp.lt.s32.totalorder %s24, 0
        %s258 = scalar_select %p257, %s24, 0
        %p259 = scmp.lt.s32.totalorder %s256, 7
        %s260 = scalar_select %p259, %s256, 7
        %s261 = smul.addr %s258, 8
        %s262 = sadd.s32 %s260, %s261
        %s263 = smul.addr %s262, 4
        %s264 = scalar_lea.vmem %s1, %s263
        %s265 = smul.u32 8, %s25
        %s266 = smul.u32 128, %s25
        %s267 = smul.u32 2, %s23
        %p268 = scmp.lt.s32.totalorder %s23, 1
        %s269 = scalar_select %p268, %s23, 1
        %p270 = scmp.lt.s32.totalorder %s24, 0
        %s271 = scalar_select %p270, %s24, 0
        %s272 = sadd.s32 %s271, %s269
        %s273 = smul.addr %s272, 8
        %s274 = scalar_lea.vmem %s3, %s273
        %v275 = vld [vmem:[%s264] sm:$0xff]
        %v276 = vld [vmem:[%s264 + $0x8] sm:$0xff]
        %v277 = vld [vmem:[%s264 + $0x10] sm:$0xff]
        %v278 = vld [vmem:[%s264 + $0x18] sm:$0xff]
        %v279 = vld [vmem:[%s220] sm:$0xff]
        %v280 = vld [vmem:[%s220 + $0x8] sm:$0xff]
        %v281 = vld [vmem:[%s220 + $0x10] sm:$0xff]
        %v282 = vld [vmem:[%s220 + $0x18] sm:$0xff]
        %v283 = vld [vmem:[%s220 + $0x20] sm:$0xff]
        %v284 = vld [vmem:[%s220 + $0x28] sm:$0xff]
        %v285 = vld [vmem:[%s220 + $0x30] sm:$0xff]
        %v286 = vld [vmem:[%s220 + $0x38] sm:$0xff]
        %v287 = vld [vmem:[%s220 + $0x40] sm:$0xff]
        %v288 = vld [vmem:[%s220 + $0x48] sm:$0xff]
        %v289 = vld [vmem:[%s220 + $0x50] sm:$0xff]
        %v290 = vld [vmem:[%s220 + $0x58] sm:$0xff]
        %v291 = vld [vmem:[%s220 + $0x60] sm:$0xff]
        %v292 = vld [vmem:[%s220 + $0x68] sm:$0xff]
        %v293 = vld [vmem:[%s220 + $0x70] sm:$0xff]
        %v294 = vld [vmem:[%s220 + $0x78] sm:$0xff]
        %v295 = vld [vmem:[%s220 + $0x80] sm:$0xff]
        %v296 = vld [vmem:[%s220 + $0x88] sm:$0xff]
        %v297 = vld [vmem:[%s220 + $0x90] sm:$0xff]
        %v298 = vld [vmem:[%s220 + $0x98] sm:$0xff]
        %v299 = vld [vmem:[%s220 + $0xa0] sm:$0xff]
        %v300 = vld [vmem:[%s220 + $0xa8] sm:$0xff]
        %v301 = vld [vmem:[%s220 + $0xb0] sm:$0xff]
        %v302 = vld [vmem:[%s220 + $0xb8] sm:$0xff]
        %v303 = vld [vmem:[%s220 + $0xc0] sm:$0xff]
        %v304 = vld [vmem:[%s220 + $0xc8] sm:$0xff]
        %v305 = vld [vmem:[%s220 + $0xd0] sm:$0xff]
        %v306 = vld [vmem:[%s220 + $0xd8] sm:$0xff]
        %v307 = vld [vmem:[%s220 + $0xe0] sm:$0xff]
        %v308 = vld [vmem:[%s220 + $0xe8] sm:$0xff]
        %v309 = vld [vmem:[%s220 + $0xf0] sm:$0xff]
        %v310 = vld [vmem:[%s220 + $0xf8] sm:$0xff]
        %v311 = vld [vmem:[%s220 + $0x100] sm:$0xff]
        %v312 = vld [vmem:[%s220 + $0x108] sm:$0xff]
        %v313 = vld [vmem:[%s220 + $0x110] sm:$0xff]
        %v314 = vld [vmem:[%s220 + $0x118] sm:$0xff]
        %v315 = vld [vmem:[%s220 + $0x120] sm:$0xff]
        %v316 = vld [vmem:[%s220 + $0x128] sm:$0xff]
        %v317 = vld [vmem:[%s220 + $0x130] sm:$0xff]
        %v318 = vld [vmem:[%s220 + $0x138] sm:$0xff]
        %v319 = vld [vmem:[%s220 + $0x140] sm:$0xff]
        %v320 = vld [vmem:[%s220 + $0x148] sm:$0xff]
        %v321 = vld [vmem:[%s220 + $0x150] sm:$0xff]
        %v322 = vld [vmem:[%s220 + $0x158] sm:$0xff]
        %v323 = vld [vmem:[%s220 + $0x160] sm:$0xff]
        %v324 = vld [vmem:[%s220 + $0x168] sm:$0xff]
        %v325 = vld [vmem:[%s220 + $0x170] sm:$0xff]
        %v326 = vld [vmem:[%s220 + $0x178] sm:$0xff]
        %v327 = vld [vmem:[%s220 + $0x180] sm:$0xff]
        %v328 = vld [vmem:[%s220 + $0x188] sm:$0xff]
        %v329 = vld [vmem:[%s220 + $0x190] sm:$0xff]
        %v330 = vld [vmem:[%s220 + $0x198] sm:$0xff]
        %v331 = vld [vmem:[%s220 + $0x1a0] sm:$0xff]
        %v332 = vld [vmem:[%s220 + $0x1a8] sm:$0xff]
        %v333 = vld [vmem:[%s220 + $0x1b0] sm:$0xff]
        %v334 = vld [vmem:[%s220 + $0x1b8] sm:$0xff]
        %v335 = vld [vmem:[%s220 + $0x1c0] sm:$0xff]
        %v336 = vld [vmem:[%s220 + $0x1c8] sm:$0xff]
        %v337 = vld [vmem:[%s220 + $0x1d0] sm:$0xff]
        %v338 = vld [vmem:[%s220 + $0x1d8] sm:$0xff]
        %v339 = vld [vmem:[%s220 + $0x1e0] sm:$0xff]
        %v340 = vld [vmem:[%s220 + $0x1e8] sm:$0xff]
        %v341 = vld [vmem:[%s220 + $0x1f0] sm:$0xff]
        %v342 = vld [vmem:[%s220 + $0x1f8] sm:$0xff]
        %v343 = vld [vmem:[%s220 + $0x200] sm:$0xff]
        %v344 = vld [vmem:[%s220 + $0x208] sm:$0xff]
        %v345 = vld [vmem:[%s220 + $0x210] sm:$0xff]
        %v346 = vld [vmem:[%s220 + $0x218] sm:$0xff]
        %v347 = vld [vmem:[%s220 + $0x220] sm:$0xff]
        %v348 = vld [vmem:[%s220 + $0x228] sm:$0xff]
        %v349 = vld [vmem:[%s220 + $0x230] sm:$0xff]
        %v350 = vld [vmem:[%s220 + $0x238] sm:$0xff]
        %v351 = vld [vmem:[%s220 + $0x240] sm:$0xff]
        %v352 = vld [vmem:[%s220 + $0x248] sm:$0xff]
        %v353 = vld [vmem:[%s220 + $0x250] sm:$0xff]
        %v354 = vld [vmem:[%s220 + $0x258] sm:$0xff]
        %v355 = vld [vmem:[%s220 + $0x260] sm:$0xff]
        %v356 = vld [vmem:[%s220 + $0x268] sm:$0xff]
        %v357 = vld [vmem:[%s220 + $0x270] sm:$0xff]
        %v358 = vld [vmem:[%s220 + $0x278] sm:$0xff]
        %v359 = vld [vmem:[%s220 + $0x280] sm:$0xff]
        %v360 = vld [vmem:[%s220 + $0x288] sm:$0xff]
        %v361 = vld [vmem:[%s220 + $0x290] sm:$0xff]
        %v362 = vld [vmem:[%s220 + $0x298] sm:$0xff]
        %v363 = vld [vmem:[%s220 + $0x2a0] sm:$0xff]
        %v364 = vld [vmem:[%s220 + $0x2a8] sm:$0xff]
        %v365 = vld [vmem:[%s220 + $0x2b0] sm:$0xff]
        %v366 = vld [vmem:[%s220 + $0x2b8] sm:$0xff]
        %v367 = vld [vmem:[%s220 + $0x2c0] sm:$0xff]
        %v368 = vld [vmem:[%s220 + $0x2c8] sm:$0xff]
        %v369 = vld [vmem:[%s220 + $0x2d0] sm:$0xff]
        %v370 = vld [vmem:[%s220 + $0x2d8] sm:$0xff]
        %v371 = vld [vmem:[%s220 + $0x2e0] sm:$0xff]
        %v372 = vld [vmem:[%s220 + $0x2e8] sm:$0xff]
        %v373 = vld [vmem:[%s220 + $0x2f0] sm:$0xff]
        %v374 = vld [vmem:[%s220 + $0x2f8] sm:$0xff]
        %v375 = vld [vmem:[%s220 + $0x300] sm:$0xff]
        %v376 = vld [vmem:[%s220 + $0x308] sm:$0xff]
        %v377 = vld [vmem:[%s220 + $0x310] sm:$0xff]
        %v378 = vld [vmem:[%s220 + $0x318] sm:$0xff]
        %v379 = vld [vmem:[%s220 + $0x320] sm:$0xff]
        %v380 = vld [vmem:[%s220 + $0x328] sm:$0xff]
        %v381 = vld [vmem:[%s220 + $0x330] sm:$0xff]
        %v382 = vld [vmem:[%s220 + $0x338] sm:$0xff]
        %v383 = vld [vmem:[%s220 + $0x340] sm:$0xff]
        %v384 = vld [vmem:[%s220 + $0x348] sm:$0xff]
        %v385 = vld [vmem:[%s220 + $0x350] sm:$0xff]
        %v386 = vld [vmem:[%s220 + $0x358] sm:$0xff]
        %v387 = vld [vmem:[%s220 + $0x360] sm:$0xff]
        %v388 = vld [vmem:[%s220 + $0x368] sm:$0xff]
        %v389 = vld [vmem:[%s220 + $0x370] sm:$0xff]
        %v390 = vld [vmem:[%s220 + $0x378] sm:$0xff]
        %v391 = vld [vmem:[%s220 + $0x380] sm:$0xff]
        %v392 = vld [vmem:[%s220 + $0x388] sm:$0xff]
        %v393 = vld [vmem:[%s220 + $0x390] sm:$0xff]
        %v394 = vld [vmem:[%s220 + $0x398] sm:$0xff]
        %v395 = vld [vmem:[%s220 + $0x3a0] sm:$0xff]
        %v396 = vld [vmem:[%s220 + $0x3a8] sm:$0xff]
        %v397 = vld [vmem:[%s220 + $0x3b0] sm:$0xff]
        %v398 = vld [vmem:[%s220 + $0x3b8] sm:$0xff]
        %v399 = vld [vmem:[%s220 + $0x3c0] sm:$0xff]
        %v400 = vld [vmem:[%s220 + $0x3c8] sm:$0xff]
        %v401 = vld [vmem:[%s220 + $0x3d0] sm:$0xff]
        %v402 = vld [vmem:[%s220 + $0x3d8] sm:$0xff]
        %v403 = vld [vmem:[%s220 + $0x3e0] sm:$0xff]
        %v404 = vld [vmem:[%s220 + $0x3e8] sm:$0xff]
        %v405 = vld [vmem:[%s220 + $0x3f0] sm:$0xff]
        %v406 = vld [vmem:[%s220 + $0x3f8] sm:$0xff]
        %v411 = vunpack.c.l.b16 %v275
        %v412 = vunpack.c.h.b16 %v275
        %v413 = vunpack.c.l.b16 %v276
        %v414 = vunpack.c.h.b16 %v276
        %v415 = vunpack.c.l.b16 %v277
        %v416 = vunpack.c.h.b16 %v277
        %v417 = vunpack.c.l.b16 %v278
        %v418 = vunpack.c.h.b16 %v278
        %v419 = vpack.c.b16 %v411, %v411
        %v420 = vpack.c.b16 %v412, %v412
        %v421 = vpack.c.b16 %v413, %v413
        %v422 = vpack.c.b16 %v414, %v414
        %v423 = vpack.c.b16 %v415, %v415
        %v424 = vpack.c.b16 %v416, %v416
        %v425 = vpack.c.b16 %v417, %v417
        %v426 = vpack.c.b16 %v418, %v418
        %v563 = vunpack.c.l.b16 %v279
        %v564 = vunpack.c.h.b16 %v279
        %v565 = vunpack.c.l.b16 %v280
        %v566 = vunpack.c.h.b16 %v280
        %v567 = vunpack.c.l.b16 %v281
        %v568 = vunpack.c.h.b16 %v281
        %v569 = vunpack.c.l.b16 %v282
        %v570 = vunpack.c.h.b16 %v282
        %v571 = vunpack.c.l.b16 %v283
        %v572 = vunpack.c.h.b16 %v283
        %v573 = vunpack.c.l.b16 %v284
        %v574 = vunpack.c.h.b16 %v284
        %v575 = vunpack.c.l.b16 %v285
        %v576 = vunpack.c.h.b16 %v285
        %v577 = vunpack.c.l.b16 %v286
        %v578 = vunpack.c.h.b16 %v286
        %v579 = vunpack.c.l.b16 %v287
        %v580 = vunpack.c.h.b16 %v287
        %v581 = vunpack.c.l.b16 %v288
        %v582 = vunpack.c.h.b16 %v288
        %v583 = vunpack.c.l.b16 %v289
        %v584 = vunpack.c.h.b16 %v289
        %v585 = vunpack.c.l.b16 %v290
        %v586 = vunpack.c.h.b16 %v290
        %v587 = vunpack.c.l.b16 %v291
        %v588 = vunpack.c.h.b16 %v291
        %v589 = vunpack.c.l.b16 %v292
        %v590 = vunpack.c.h.b16 %v292
        %v591 = vunpack.c.l.b16 %v293
        %v592 = vunpack.c.h.b16 %v293
        %v593 = vunpack.c.l.b16 %v294
        %v594 = vunpack.c.h.b16 %v294
        %v595 = vunpack.c.l.b16 %v295
        %v596 = vunpack.c.h.b16 %v295
        %v597 = vunpack.c.l.b16 %v296
        %v598 = vunpack.c.h.b16 %v296
        %v599 = vunpack.c.l.b16 %v297
        %v600 = vunpack.c.h.b16 %v297
        %v601 = vunpack.c.l.b16 %v298
        %v602 = vunpack.c.h.b16 %v298
        %v603 = vunpack.c.l.b16 %v299
        %v604 = vunpack.c.h.b16 %v299
        %v605 = vunpack.c.l.b16 %v300
        %v606 = vunpack.c.h.b16 %v300
        %v607 = vunpack.c.l.b16 %v301
        %v608 = vunpack.c.h.b16 %v301
        %v609 = vunpack.c.l.b16 %v302
        %v610 = vunpack.c.h.b16 %v302
        %v611 = vunpack.c.l.b16 %v303
        %v612 = vunpack.c.h.b16 %v303
        %v613 = vunpack.c.l.b16 %v304
        %v614 = vunpack.c.h.b16 %v304
        %v615 = vunpack.c.l.b16 %v305
        %v616 = vunpack.c.h.b16 %v305
        %v617 = vunpack.c.l.b16 %v306
        %v618 = vunpack.c.h.b16 %v306
        %v619 = vunpack.c.l.b16 %v307
        %v620 = vunpack.c.h.b16 %v307
        %v621 = vunpack.c.l.b16 %v308
        %v622 = vunpack.c.h.b16 %v308
        %v623 = vunpack.c.l.b16 %v309
        %v624 = vunpack.c.h.b16 %v309
        %v625 = vunpack.c.l.b16 %v310
        %v626 = vunpack.c.h.b16 %v310
        %v627 = vunpack.c.l.b16 %v311
        %v628 = vunpack.c.h.b16 %v311
        %v629 = vunpack.c.l.b16 %v312
        %v630 = vunpack.c.h.b16 %v312
        %v631 = vunpack.c.l.b16 %v313
        %v632 = vunpack.c.h.b16 %v313
        %v633 = vunpack.c.l.b16 %v314
        %v634 = vunpack.c.h.b16 %v314
        %v635 = vunpack.c.l.b16 %v315
        %v636 = vunpack.c.h.b16 %v315
        %v637 = vunpack.c.l.b16 %v316
        %v638 = vunpack.c.h.b16 %v316
        %v639 = vunpack.c.l.b16 %v317
        %v640 = vunpack.c.h.b16 %v317
        %v641 = vunpack.c.l.b16 %v318
        %v642 = vunpack.c.h.b16 %v318
        %v643 = vunpack.c.l.b16 %v319
        %v644 = vunpack.c.h.b16 %v319
        %v645 = vunpack.c.l.b16 %v320
        %v646 = vunpack.c.h.b16 %v320
        %v647 = vunpack.c.l.b16 %v321
        %v648 = vunpack.c.h.b16 %v321
        %v649 = vunpack.c.l.b16 %v322
        %v650 = vunpack.c.h.b16 %v322
        %v651 = vunpack.c.l.b16 %v323
        %v652 = vunpack.c.h.b16 %v323
        %v653 = vunpack.c.l.b16 %v324
        %v654 = vunpack.c.h.b16 %v324
        %v655 = vunpack.c.l.b16 %v325
        %v656 = vunpack.c.h.b16 %v325
        %v657 = vunpack.c.l.b16 %v326
        %v658 = vunpack.c.h.b16 %v326
        %v659 = vunpack.c.l.b16 %v327
        %v660 = vunpack.c.h.b16 %v327
        %v661 = vunpack.c.l.b16 %v328
        %v662 = vunpack.c.h.b16 %v328
        %v663 = vunpack.c.l.b16 %v329
        %v664 = vunpack.c.h.b16 %v329
        %v665 = vunpack.c.l.b16 %v330
        %v666 = vunpack.c.h.b16 %v330
        %v667 = vunpack.c.l.b16 %v331
        %v668 = vunpack.c.h.b16 %v331
        %v669 = vunpack.c.l.b16 %v332
        %v670 = vunpack.c.h.b16 %v332
        %v671 = vunpack.c.l.b16 %v333
        %v672 = vunpack.c.h.b16 %v333
        %v673 = vunpack.c.l.b16 %v334
        %v674 = vunpack.c.h.b16 %v334
        %v675 = vunpack.c.l.b16 %v335
        %v676 = vunpack.c.h.b16 %v335
        %v677 = vunpack.c.l.b16 %v336
        %v678 = vunpack.c.h.b16 %v336
        %v679 = vunpack.c.l.b16 %v337
        %v680 = vunpack.c.h.b16 %v337
        %v681 = vunpack.c.l.b16 %v338
        %v682 = vunpack.c.h.b16 %v338
        %v683 = vunpack.c.l.b16 %v339
        %v684 = vunpack.c.h.b16 %v339
        %v685 = vunpack.c.l.b16 %v340
        %v686 = vunpack.c.h.b16 %v340
        %v687 = vunpack.c.l.b16 %v341
        %v688 = vunpack.c.h.b16 %v341
        %v689 = vunpack.c.l.b16 %v342
        %v690 = vunpack.c.h.b16 %v342
        %v691 = vunpack.c.l.b16 %v343
        %v692 = vunpack.c.h.b16 %v343
        %v693 = vunpack.c.l.b16 %v344
        %v694 = vunpack.c.h.b16 %v344
        %v695 = vunpack.c.l.b16 %v345
        %v696 = vunpack.c.h.b16 %v345
        %v697 = vunpack.c.l.b16 %v346
        %v698 = vunpack.c.h.b16 %v346
        %v699 = vunpack.c.l.b16 %v347
        %v700 = vunpack.c.h.b16 %v347
        %v701 = vunpack.c.l.b16 %v348
        %v702 = vunpack.c.h.b16 %v348
        %v703 = vunpack.c.l.b16 %v349
        %v704 = vunpack.c.h.b16 %v349
        %v705 = vunpack.c.l.b16 %v350
        %v706 = vunpack.c.h.b16 %v350
        %v707 = vunpack.c.l.b16 %v351
        %v708 = vunpack.c.h.b16 %v351
        %v709 = vunpack.c.l.b16 %v352
        %v710 = vunpack.c.h.b16 %v352
        %v711 = vunpack.c.l.b16 %v353
        %v712 = vunpack.c.h.b16 %v353
        %v713 = vunpack.c.l.b16 %v354
        %v714 = vunpack.c.h.b16 %v354
        %v715 = vunpack.c.l.b16 %v355
        %v716 = vunpack.c.h.b16 %v355
        %v717 = vunpack.c.l.b16 %v356
        %v718 = vunpack.c.h.b16 %v356
        %v719 = vunpack.c.l.b16 %v357
        %v720 = vunpack.c.h.b16 %v357
        %v721 = vunpack.c.l.b16 %v358
        %v722 = vunpack.c.h.b16 %v358
        %v723 = vunpack.c.l.b16 %v359
        %v724 = vunpack.c.h.b16 %v359
        %v725 = vunpack.c.l.b16 %v360
        %v726 = vunpack.c.h.b16 %v360
        %v727 = vunpack.c.l.b16 %v361
        %v728 = vunpack.c.h.b16 %v361
        %v729 = vunpack.c.l.b16 %v362
        %v730 = vunpack.c.h.b16 %v362
        %v731 = vunpack.c.l.b16 %v363
        %v732 = vunpack.c.h.b16 %v363
        %v733 = vunpack.c.l.b16 %v364
        %v734 = vunpack.c.h.b16 %v364
        %v735 = vunpack.c.l.b16 %v365
        %v736 = vunpack.c.h.b16 %v365
        %v737 = vunpack.c.l.b16 %v366
        %v738 = vunpack.c.h.b16 %v366
        %v739 = vunpack.c.l.b16 %v367
        %v740 = vunpack.c.h.b16 %v367
        %v741 = vunpack.c.l.b16 %v368
        %v742 = vunpack.c.h.b16 %v368
        %v743 = vunpack.c.l.b16 %v369
        %v744 = vunpack.c.h.b16 %v369
        %v745 = vunpack.c.l.b16 %v370
        %v746 = vunpack.c.h.b16 %v370
        %v747 = vunpack.c.l.b16 %v371
        %v748 = vunpack.c.h.b16 %v371
        %v749 = vunpack.c.l.b16 %v372
        %v750 = vunpack.c.h.b16 %v372
        %v751 = vunpack.c.l.b16 %v373
        %v752 = vunpack.c.h.b16 %v373
        %v753 = vunpack.c.l.b16 %v374
        %v754 = vunpack.c.h.b16 %v374
        %v755 = vunpack.c.l.b16 %v375
        %v756 = vunpack.c.h.b16 %v375
        %v757 = vunpack.c.l.b16 %v376
        %v758 = vunpack.c.h.b16 %v376
        %v759 = vunpack.c.l.b16 %v377
        %v760 = vunpack.c.h.b16 %v377
        %v761 = vunpack.c.l.b16 %v378
        %v762 = vunpack.c.h.b16 %v378
        %v763 = vunpack.c.l.b16 %v379
        %v764 = vunpack.c.h.b16 %v379
        %v765 = vunpack.c.l.b16 %v380
        %v766 = vunpack.c.h.b16 %v380
        %v767 = vunpack.c.l.b16 %v381
        %v768 = vunpack.c.h.b16 %v381
        %v769 = vunpack.c.l.b16 %v382
        %v770 = vunpack.c.h.b16 %v382
        %v771 = vunpack.c.l.b16 %v383
        %v772 = vunpack.c.h.b16 %v383
        %v773 = vunpack.c.l.b16 %v384
        %v774 = vunpack.c.h.b16 %v384
        %v775 = vunpack.c.l.b16 %v385
        %v776 = vunpack.c.h.b16 %v385
        %v777 = vunpack.c.l.b16 %v386
        %v778 = vunpack.c.h.b16 %v386
        %v779 = vunpack.c.l.b16 %v387
        %v780 = vunpack.c.h.b16 %v387
        %v781 = vunpack.c.l.b16 %v388
        %v782 = vunpack.c.h.b16 %v388
        %v783 = vunpack.c.l.b16 %v389
        %v784 = vunpack.c.h.b16 %v389
        %v785 = vunpack.c.l.b16 %v390
        %v786 = vunpack.c.h.b16 %v390
        %v787 = vunpack.c.l.b16 %v391
        %v788 = vunpack.c.h.b16 %v391
        %v789 = vunpack.c.l.b16 %v392
        %v790 = vunpack.c.h.b16 %v392
        %v791 = vunpack.c.l.b16 %v393
        %v792 = vunpack.c.h.b16 %v393
        %v793 = vunpack.c.l.b16 %v394
        %v794 = vunpack.c.h.b16 %v394
        %v795 = vunpack.c.l.b16 %v395
        %v796 = vunpack.c.h.b16 %v395
        %v797 = vunpack.c.l.b16 %v396
        %v798 = vunpack.c.h.b16 %v396
        %v799 = vunpack.c.l.b16 %v397
        %v800 = vunpack.c.h.b16 %v397
        %v801 = vunpack.c.l.b16 %v398
        %v802 = vunpack.c.h.b16 %v398
        %v803 = vunpack.c.l.b16 %v399
        %v804 = vunpack.c.h.b16 %v399
        %v805 = vunpack.c.l.b16 %v400
        %v806 = vunpack.c.h.b16 %v400
        %v807 = vunpack.c.l.b16 %v401
        %v808 = vunpack.c.h.b16 %v401
        %v809 = vunpack.c.l.b16 %v402
        %v810 = vunpack.c.h.b16 %v402
        %v811 = vunpack.c.l.b16 %v403
        %v812 = vunpack.c.h.b16 %v403
        %v813 = vunpack.c.l.b16 %v404
        %v814 = vunpack.c.h.b16 %v404
        %v815 = vunpack.c.l.b16 %v405
        %v816 = vunpack.c.h.b16 %v405
        %v817 = vunpack.c.l.b16 %v406
        %v818 = vunpack.c.h.b16 %v406
        %v819 = vpack.c.b16 %v565, %v563
        %v820 = vpack.c.b16 %v566, %v564
        %v821 = vpack.c.b16 %v569, %v567
        %v822 = vpack.c.b16 %v570, %v568
        %v823 = vpack.c.b16 %v573, %v571
        %v824 = vpack.c.b16 %v574, %v572
        %v825 = vpack.c.b16 %v577, %v575
        %v826 = vpack.c.b16 %v578, %v576
        %v827 = vpack.c.b16 %v581, %v579
        %v828 = vpack.c.b16 %v582, %v580
        %v829 = vpack.c.b16 %v585, %v583
        %v830 = vpack.c.b16 %v586, %v584
        %v831 = vpack.c.b16 %v589, %v587
        %v832 = vpack.c.b16 %v590, %v588
        %v833 = vpack.c.b16 %v593, %v591
        %v834 = vpack.c.b16 %v594, %v592
        %v835 = vpack.c.b16 %v597, %v595
        %v836 = vpack.c.b16 %v598, %v596
        %v837 = vpack.c.b16 %v601, %v599
        %v838 = vpack.c.b16 %v602, %v600
        %v839 = vpack.c.b16 %v605, %v603
        %v840 = vpack.c.b16 %v606, %v604
        %v841 = vpack.c.b16 %v609, %v607
        %v842 = vpack.c.b16 %v610, %v608
        %v843 = vpack.c.b16 %v613, %v611
        %v844 = vpack.c.b16 %v614, %v612
        %v845 = vpack.c.b16 %v617, %v615
        %v846 = vpack.c.b16 %v618, %v616
        %v847 = vpack.c.b16 %v621, %v619
        %v848 = vpack.c.b16 %v622, %v620
        %v849 = vpack.c.b16 %v625, %v623
        %v850 = vpack.c.b16 %v626, %v624
        %v851 = vpack.c.b16 %v629, %v627
        %v852 = vpack.c.b16 %v630, %v628
        %v853 = vpack.c.b16 %v633, %v631
        %v854 = vpack.c.b16 %v634, %v632
        %v855 = vpack.c.b16 %v637, %v635
        %v856 = vpack.c.b16 %v638, %v636
        %v857 = vpack.c.b16 %v641, %v639
        %v858 = vpack.c.b16 %v642, %v640
        %v859 = vpack.c.b16 %v645, %v643
        %v860 = vpack.c.b16 %v646, %v644
        %v861 = vpack.c.b16 %v649, %v647
        %v862 = vpack.c.b16 %v650, %v648
        %v863 = vpack.c.b16 %v653, %v651
        %v864 = vpack.c.b16 %v654, %v652
        %v865 = vpack.c.b16 %v657, %v655
        %v866 = vpack.c.b16 %v658, %v656
        %v867 = vpack.c.b16 %v661, %v659
        %v868 = vpack.c.b16 %v662, %v660
        %v869 = vpack.c.b16 %v665, %v663
        %v870 = vpack.c.b16 %v666, %v664
        %v871 = vpack.c.b16 %v669, %v667
        %v872 = vpack.c.b16 %v670, %v668
        %v873 = vpack.c.b16 %v673, %v671
        %v874 = vpack.c.b16 %v674, %v672
        %v875 = vpack.c.b16 %v677, %v675
        %v876 = vpack.c.b16 %v678, %v676
        %v877 = vpack.c.b16 %v681, %v679
        %v878 = vpack.c.b16 %v682, %v680
        %v879 = vpack.c.b16 %v685, %v683
        %v880 = vpack.c.b16 %v686, %v684
        %v881 = vpack.c.b16 %v689, %v687
        %v882 = vpack.c.b16 %v690, %v688
        %v883 = vpack.c.b16 %v693, %v691
        %v884 = vpack.c.b16 %v694, %v692
        %v885 = vpack.c.b16 %v697, %v695
        %v886 = vpack.c.b16 %v698, %v696
        %v887 = vpack.c.b16 %v701, %v699
        %v888 = vpack.c.b16 %v702, %v700
        %v889 = vpack.c.b16 %v705, %v703
        %v890 = vpack.c.b16 %v706, %v704
        %v891 = vpack.c.b16 %v709, %v707
        %v892 = vpack.c.b16 %v710, %v708
        %v893 = vpack.c.b16 %v713, %v711
        %v894 = vpack.c.b16 %v714, %v712
        %v895 = vpack.c.b16 %v717, %v715
        %v896 = vpack.c.b16 %v718, %v716
        %v897 = vpack.c.b16 %v721, %v719
        %v898 = vpack.c.b16 %v722, %v720
        %v899 = vpack.c.b16 %v725, %v723
        %v900 = vpack.c.b16 %v726, %v724
        %v901 = vpack.c.b16 %v729, %v727
        %v902 = vpack.c.b16 %v730, %v728
        %v903 = vpack.c.b16 %v733, %v731
        %v904 = vpack.c.b16 %v734, %v732
        %v905 = vpack.c.b16 %v737, %v735
        %v906 = vpack.c.b16 %v738, %v736
        %v907 = vpack.c.b16 %v741, %v739
        %v908 = vpack.c.b16 %v742, %v740
        %v909 = vpack.c.b16 %v745, %v743
        %v910 = vpack.c.b16 %v746, %v744
        %v911 = vpack.c.b16 %v749, %v747
        %v912 = vpack.c.b16 %v750, %v748
        %v913 = vpack.c.b16 %v753, %v751
        %v914 = vpack.c.b16 %v754, %v752
        %v915 = vpack.c.b16 %v757, %v755
        %v916 = vpack.c.b16 %v758, %v756
        %v917 = vpack.c.b16 %v761, %v759
        %v918 = vpack.c.b16 %v762, %v760
        %v919 = vpack.c.b16 %v765, %v763
        %v920 = vpack.c.b16 %v766, %v764
        %v921 = vpack.c.b16 %v769, %v767
        %v922 = vpack.c.b16 %v770, %v768
        %v923 = vpack.c.b16 %v773, %v771
        %v924 = vpack.c.b16 %v774, %v772
        %v925 = vpack.c.b16 %v777, %v775
        %v926 = vpack.c.b16 %v778, %v776
        %v927 = vpack.c.b16 %v781, %v779
        %v928 = vpack.c.b16 %v782, %v780
        %v929 = vpack.c.b16 %v785, %v783
        %v930 = vpack.c.b16 %v786, %v784
        %v931 = vpack.c.b16 %v789, %v787
        %v932 = vpack.c.b16 %v790, %v788
        %v933 = vpack.c.b16 %v793, %v791
        %v934 = vpack.c.b16 %v794, %v792
        %v935 = vpack.c.b16 %v797, %v795
        %v936 = vpack.c.b16 %v798, %v796
        %v937 = vpack.c.b16 %v801, %v799
        %v938 = vpack.c.b16 %v802, %v800
        %v939 = vpack.c.b16 %v805, %v803
        %v940 = vpack.c.b16 %v806, %v804
        %v941 = vpack.c.b16 %v809, %v807
        %v942 = vpack.c.b16 %v810, %v808
        %v943 = vpack.c.b16 %v813, %v811
        %v944 = vpack.c.b16 %v814, %v812
        %v945 = vpack.c.b16 %v817, %v815
        %v946 = vpack.c.b16 %v818, %v816
        %1075 = vmatpush.bf16.msra.mxu0 %v833
        %1076 = vmatpush.bf16.msra.mxu0 %v831
        %1077 = vmatpush.bf16.msra.mxu0 %v829
        %1078 = vmatpush.bf16.msra.mxu0 %v827
        %1079 = vmatpush.bf16.msra.mxu0 %v825
        %1080 = vmatpush.bf16.msra.mxu0 %v823
        %1081 = vmatpush.bf16.msra.mxu0 %v821
        %1082 = vmatpush.bf16.msra.mxu0 %v819
        %1083 = vmatmul.bf16.gmra.mxu0 %v419
        %v1084 = vpop.f32.mrf.mxu0
        %v1085 = vadd.f32 0.0, %v1084
        %v1086 = vpop.f32.mrf.mxu0
        %1087 = vdwg.mxu0
        %1088 = vmatpush.bf16.msra.mxu0 %v849
        %1089 = vmatpush.bf16.msra.mxu0 %v847
        %1090 = vmatpush.bf16.msra.mxu0 %v845
        %1091 = vmatpush.bf16.msra.mxu0 %v843
        %1092 = vmatpush.bf16.msra.mxu0 %v841
        %1093 = vmatpush.bf16.msra.mxu0 %v839
        %1094 = vmatpush.bf16.msra.mxu0 %v837
        %1095 = vmatpush.bf16.msra.mxu0 %v835
        %1096 = vmatmul.bf16.gmra.mxu0 %v420
        %v1097 = vpop.f32.mrf.mxu0
        %v1098 = vadd.f32 %v1085, %v1097
        %v1099 = vpop.f32.mrf.mxu0
        %1100 = vdwg.mxu0
        %1101 = vmatpush.bf16.msra.mxu0 %v865
        %1102 = vmatpush.bf16.msra.mxu0 %v863
        %1103 = vmatpush.bf16.msra.mxu0 %v861
        %1104 = vmatpush.bf16.msra.mxu0 %v859
        %1105 = vmatpush.bf16.msra.mxu0 %v857
        %1106 = vmatpush.bf16.msra.mxu0 %v855
        %1107 = vmatpush.bf16.msra.mxu0 %v853
        %1108 = vmatpush.bf16.msra.mxu0 %v851
        %1109 = vmatmul.bf16.gmra.mxu0 %v421
        %v1110 = vpop.f32.mrf.mxu0
        %v1111 = vadd.f32 %v1098, %v1110
        %v1112 = vpop.f32.mrf.mxu0
        %1113 = vdwg.mxu0
        %1114 = vmatpush.bf16.msra.mxu0 %v881
        %1115 = vmatpush.bf16.msra.mxu0 %v879
        %1116 = vmatpush.bf16.msra.mxu0 %v877
        %1117 = vmatpush.bf16.msra.mxu0 %v875
        %1118 = vmatpush.bf16.msra.mxu0 %v873
        %1119 = vmatpush.bf16.msra.mxu0 %v871
        %1120 = vmatpush.bf16.msra.mxu0 %v869
        %1121 = vmatpush.bf16.msra.mxu0 %v867
        %1122 = vmatmul.bf16.gmra.mxu0 %v422
        %v1123 = vpop.f32.mrf.mxu0
        %v1124 = vadd.f32 %v1111, %v1123
        %v1125 = vpop.f32.mrf.mxu0
        %1126 = vdwg.mxu0
        %1127 = vmatpush.bf16.msra.mxu0 %v897
        %1128 = vmatpush.bf16.msra.mxu0 %v895
        %1129 = vmatpush.bf16.msra.mxu0 %v893
        %1130 = vmatpush.bf16.msra.mxu0 %v891
        %1131 = vmatpush.bf16.msra.mxu0 %v889
        %1132 = vmatpush.bf16.msra.mxu0 %v887
        %1133 = vmatpush.bf16.msra.mxu0 %v885
        %1134 = vmatpush.bf16.msra.mxu0 %v883
        %1135 = vmatmul.bf16.gmra.mxu0 %v423
        %v1136 = vpop.f32.mrf.mxu0
        %v1137 = vadd.f32 %v1124, %v1136
        %v1138 = vpop.f32.mrf.mxu0
        %1139 = vdwg.mxu0
        %1140 = vmatpush.bf16.msra.mxu0 %v913
        %1141 = vmatpush.bf16.msra.mxu0 %v911
        %1142 = vmatpush.bf16.msra.mxu0 %v909
        %1143 = vmatpush.bf16.msra.mxu0 %v907
        %1144 = vmatpush.bf16.msra.mxu0 %v905
        %1145 = vmatpush.bf16.msra.mxu0 %v903
        %1146 = vmatpush.bf16.msra.mxu0 %v901
        %1147 = vmatpush.bf16.msra.mxu0 %v899
        %1148 = vmatmul.bf16.gmra.mxu0 %v424
        %v1149 = vpop.f32.mrf.mxu0
        %v1150 = vadd.f32 %v1137, %v1149
        %v1151 = vpop.f32.mrf.mxu0
        %1152 = vdwg.mxu0
        %1153 = vmatpush.bf16.msra.mxu0 %v929
        %1154 = vmatpush.bf16.msra.mxu0 %v927
        %1155 = vmatpush.bf16.msra.mxu0 %v925
        %1156 = vmatpush.bf16.msra.mxu0 %v923
        %1157 = vmatpush.bf16.msra.mxu0 %v921
        %1158 = vmatpush.bf16.msra.mxu0 %v919
        %1159 = vmatpush.bf16.msra.mxu0 %v917
        %1160 = vmatpush.bf16.msra.mxu0 %v915
        %1161 = vmatmul.bf16.gmra.mxu0 %v425
        %v1162 = vpop.f32.mrf.mxu0
        %v1163 = vadd.f32 %v1150, %v1162
        %v1164 = vpop.f32.mrf.mxu0
        %1165 = vdwg.mxu0
        %1166 = vmatpush.bf16.msra.mxu0 %v945
        %1167 = vmatpush.bf16.msra.mxu0 %v943
        %1168 = vmatpush.bf16.msra.mxu0 %v941
        %1169 = vmatpush.bf16.msra.mxu0 %v939
        %1170 = vmatpush.bf16.msra.mxu0 %v937
        %1171 = vmatpush.bf16.msra.mxu0 %v935
        %1172 = vmatpush.bf16.msra.mxu0 %v933
        %1173 = vmatpush.bf16.msra.mxu0 %v931
        %1174 = vmatmul.bf16.gmra.mxu0 %v426
        %v1175 = vpop.f32.mrf.mxu0
        %v1176 = vadd.f32 %v1163, %v1175
        %v1177 = vpop.f32.mrf.mxu0
        %1178 = vdwg.mxu0
        %1179 = vmatpush.bf16.msra.mxu0 %v834
        %1180 = vmatpush.bf16.msra.mxu0 %v832
        %1181 = vmatpush.bf16.msra.mxu0 %v830
        %1182 = vmatpush.bf16.msra.mxu0 %v828
        %1183 = vmatpush.bf16.msra.mxu0 %v826
        %1184 = vmatpush.bf16.msra.mxu0 %v824
        %1185 = vmatpush.bf16.msra.mxu0 %v822
        %1186 = vmatpush.bf16.msra.mxu0 %v820
        %1187 = vmatmul.bf16.gmra.mxu0 %v419
        %v1188 = vpop.f32.mrf.mxu0
        %v1189 = vadd.f32 0.0, %v1188
        %v1190 = vpop.f32.mrf.mxu0
        %1191 = vdwg.mxu0
        %1192 = vmatpush.bf16.msra.mxu0 %v850
        %1193 = vmatpush.bf16.msra.mxu0 %v848
        %1194 = vmatpush.bf16.msra.mxu0 %v846
        %1195 = vmatpush.bf16.msra.mxu0 %v844
        %1196 = vmatpush.bf16.msra.mxu0 %v842
        %1197 = vmatpush.bf16.msra.mxu0 %v840
        %1198 = vmatpush.bf16.msra.mxu0 %v838
        %1199 = vmatpush.bf16.msra.mxu0 %v836
        %1200 = vmatmul.bf16.gmra.mxu0 %v420
        %v1201 = vpop.f32.mrf.mxu0
        %v1202 = vadd.f32 %v1189, %v1201
        %v1203 = vpop.f32.mrf.mxu0
        %1204 = vdwg.mxu0
        %1205 = vmatpush.bf16.msra.mxu0 %v866
        %1206 = vmatpush.bf16.msra.mxu0 %v864
        %1207 = vmatpush.bf16.msra.mxu0 %v862
        %1208 = vmatpush.bf16.msra.mxu0 %v860
        %1209 = vmatpush.bf16.msra.mxu0 %v858
        %1210 = vmatpush.bf16.msra.mxu0 %v856
        %1211 = vmatpush.bf16.msra.mxu0 %v854
        %1212 = vmatpush.bf16.msra.mxu0 %v852
        %1213 = vmatmul.bf16.gmra.mxu0 %v421
        %v1214 = vpop.f32.mrf.mxu0
        %v1215 = vadd.f32 %v1202, %v1214
        %v1216 = vpop.f32.mrf.mxu0
        %1217 = vdwg.mxu0
        %1218 = vmatpush.bf16.msra.mxu0 %v882
        %1219 = vmatpush.bf16.msra.mxu0 %v880
        %1220 = vmatpush.bf16.msra.mxu0 %v878
        %1221 = vmatpush.bf16.msra.mxu0 %v876
        %1222 = vmatpush.bf16.msra.mxu0 %v874
        %1223 = vmatpush.bf16.msra.mxu0 %v872
        %1224 = vmatpush.bf16.msra.mxu0 %v870
        %1225 = vmatpush.bf16.msra.mxu0 %v868
        %1226 = vmatmul.bf16.gmra.mxu0 %v422
        %v1227 = vpop.f32.mrf.mxu0
        %v1228 = vadd.f32 %v1215, %v1227
        %v1229 = vpop.f32.mrf.mxu0
        %1230 = vdwg.mxu0
        %1231 = vmatpush.bf16.msra.mxu0 %v898
        %1232 = vmatpush.bf16.msra.mxu0 %v896
        %1233 = vmatpush.bf16.msra.mxu0 %v894
        %1234 = vmatpush.bf16.msra.mxu0 %v892
        %1235 = vmatpush.bf16.msra.mxu0 %v890
        %1236 = vmatpush.bf16.msra.mxu0 %v888
        %1237 = vmatpush.bf16.msra.mxu0 %v886
        %1238 = vmatpush.bf16.msra.mxu0 %v884
        %1239 = vmatmul.bf16.gmra.mxu0 %v423
        %v1240 = vpop.f32.mrf.mxu0
        %v1241 = vadd.f32 %v1228, %v1240
        %v1242 = vpop.f32.mrf.mxu0
        %1243 = vdwg.mxu0
        %1244 = vmatpush.bf16.msra.mxu0 %v914
        %1245 = vmatpush.bf16.msra.mxu0 %v912
        %1246 = vmatpush.bf16.msra.mxu0 %v910
        %1247 = vmatpush.bf16.msra.mxu0 %v908
        %1248 = vmatpush.bf16.msra.mxu0 %v906
        %1249 = vmatpush.bf16.msra.mxu0 %v904
        %1250 = vmatpush.bf16.msra.mxu0 %v902
        %1251 = vmatpush.bf16.msra.mxu0 %v900
        %1252 = vmatmul.bf16.gmra.mxu0 %v424
        %v1253 = vpop.f32.mrf.mxu0
        %v1254 = vadd.f32 %v1241, %v1253
        %v1255 = vpop.f32.mrf.mxu0
        %1256 = vdwg.mxu0
        %1257 = vmatpush.bf16.msra.mxu0 %v930
        %1258 = vmatpush.bf16.msra.mxu0 %v928
        %1259 = vmatpush.bf16.msra.mxu0 %v926
        %1260 = vmatpush.bf16.msra.mxu0 %v924
        %1261 = vmatpush.bf16.msra.mxu0 %v922
        %1262 = vmatpush.bf16.msra.mxu0 %v920
        %1263 = vmatpush.bf16.msra.mxu0 %v918
        %1264 = vmatpush.bf16.msra.mxu0 %v916
        %1265 = vmatmul.bf16.gmra.mxu0 %v425
        %v1266 = vpop.f32.mrf.mxu0
        %v1267 = vadd.f32 %v1254, %v1266
        %v1268 = vpop.f32.mrf.mxu0
        %1269 = vdwg.mxu0
        %1270 = vmatpush.bf16.msra.mxu0 %v946
        %1271 = vmatpush.bf16.msra.mxu0 %v944
        %1272 = vmatpush.bf16.msra.mxu0 %v942
        %1273 = vmatpush.bf16.msra.mxu0 %v940
        %1274 = vmatpush.bf16.msra.mxu0 %v938
        %1275 = vmatpush.bf16.msra.mxu0 %v936
        %1276 = vmatpush.bf16.msra.mxu0 %v934
        %1277 = vmatpush.bf16.msra.mxu0 %v932
        %1278 = vmatmul.bf16.gmra.mxu0 %v426
        %v1279 = vpop.f32.mrf.mxu0
        %v1280 = vadd.f32 %v1267, %v1279
        %v1281 = vpop.f32.mrf.mxu0
        %1282 = vdwg.mxu0
        %p1283 = scmp.eq.s32.totalorder %s25, 0
        // Predicated region
        $region41: #{adaptive_ensemble.1} parent=31 // pred_check
          %p1284 = pneg %p1283
        $region42: #{adaptive_ensemble.1} parent=31 // pred_check_branch
          %1286 = sbr.rel (%p1284) target = $region44
        $region43: #{adaptive_ensemble.1} parent=31 // pred_region
          %1287 = vst [vmem:[#allocation2] sm:$0xff] %v1176
          %1288 = vst [vmem:[#allocation2 + $0x8] sm:$0xff] %v1280
        $region44: #{adaptive_ensemble.1} parent=31 // pred_fallthru
          _
        %p1289 = scmp.ne.s32.totalorder %s25, 0
        // Predicated region
        $region45: #{adaptive_ensemble.1} parent=31 // pred_check
          %p1290 = pneg %p1289
        $region46: #{adaptive_ensemble.1} parent=31 // pred_check_branch
          %1292 = sbr.rel (%p1290) target = $region48
        $region47: #{adaptive_ensemble.1} parent=31 // pred_region
          %v1293 = vld [vmem:[#allocation2] sm:$0xff]
          %v1294 = vld [vmem:[#allocation2 + $0x8] sm:$0xff]
          %v1295 = vadd.f32 %v1293, %v1176
          %v1296 = vadd.f32 %v1294, %v1280
          %1297 = vst [vmem:[#allocation2] sm:$0xff] %v1295
          %1298 = vst [vmem:[#allocation2 + $0x8] sm:$0xff] %v1296
        $region48: #{adaptive_ensemble.1} parent=31 // pred_fallthru
          _
        // Predicated region
        $region49: #{adaptive_ensemble.1} parent=31 // pred_check
          %p1299 = pneg %p1283
        $region50: #{adaptive_ensemble.1} parent=31 // pred_check_branch
          %1301 = sbr.rel (%p1299) target = $region52
        $region51: #{adaptive_ensemble.1} parent=31 // pred_region
          %v1302 = vld [vmem:[#allocation2] sm:$0xff]
          %v1303 = vld [vmem:[#allocation2 + $0x8] sm:$0xff]
          %s1304 = smul.u32 %s23, 2
          %s1305 = sld [smem:[#allocation3 + %s1304]]
          %v1306 = vstv %s1305
          %v1307 = vmul.f32 %v1306, %v1302
          %s1308 = sadd.s32 %s1304, 1
          %s1309 = sld [smem:[#allocation3 + %s1308]]
          %v1310 = vstv %s1309
          %v1311 = vmul.f32 %v1310, %v1303
          %v1312 = vadd.f32 %v1307, %v1311
          %1313 = vst [vmem:[%s274] sm:$0xff] %v1312
        $region52: #{adaptive_ensemble.1} parent=31 // pred_fallthru
          _
        %p1314 = scmp.lt.s32.totalorder %s23, 1
        %s1315 = scalar_select %p1314, %s23, 1
        %p1316 = scmp.lt.s32.totalorder %s24, 0
        %s1317 = scalar_select %p1316, %s24, 0
        %s1318 = sadd.s32 %s1317, %s1315
        %s1319 = smul.addr %s1318, 8
        %s1320 = scalar_lea.vmem %s3, %s1319
        // Predicated region
        $region53: #{adaptive_ensemble.1} parent=31 // pred_check
          %p1321 = pneg %p134
        $region54: #{adaptive_ensemble.1} parent=31 // pred_check_branch
          %1323 = sbr.rel (%p1321) target = $region56
        $region55: #{adaptive_ensemble.1} parent=31 // pred_region
          _
        $region56: #{adaptive_ensemble.1} parent=31 // pred_fallthru
          _
      $region32: #{adaptive_ensemble.1} parent=5 // pred_fallthru
        _
      %p1324 = scmp.le.s32.totalorder 2, %s13
      // Predicated region
      $region57: #{adaptive_ensemble.1} parent=5 // pred_check
        %p1325 = pneg %p1324
      $region58: #{adaptive_ensemble.1} parent=5 // pred_check_branch
        %1327 = sbr.rel (%p1325) target = $region60
      $region59: #{adaptive_ensemble.1} parent=5 // pred_region
        %s1328 = ssub.s32 %s13, 2
        // Predicated region
        $region61: #{adaptive_ensemble.1} parent=59 // pred_check
          %p1329 = pneg %p140
        $region62: #{adaptive_ensemble.1} parent=59 // pred_check_branch
          %1331 = sbr.rel (%p1329) target = $region64
        $region63: #{adaptive_ensemble.1} parent=59 // pred_region
          %p1332 = scmp.lt.s32.totalorder %s26, 1
          %s1333 = scalar_select %p1332, %s26, 1
          %p1334 = scmp.lt.s32.totalorder %s27, 0
          %s1335 = scalar_select %p1334, %s27, 0
          %s1336 = sadd.s32 %s1335, %s1333
          %s1337 = smul.addr %s1336, 8
          %s1338 = scalar_lea.vmem %s3, %s1337
        $region64: #{adaptive_ensemble.1} parent=59 // pred_fallthru
          _
      $region60: #{adaptive_ensemble.1} parent=5 // pred_fallthru
        _
    $region6: #{adaptive_ensemble.1} parent=1 // loop_footer
      %s17 = sadd.s32 1, %s13
    $region7: #{adaptive_ensemble.1} parent=1 // loop_footer_branch
      %12 = sbr.rel target = $region3
    $region8: #{adaptive_ensemble.1} parent=1 // loop_exit
      _
    %1339 = vsyncpa [#allocation4], 1
    %s1340 = scalar_lea.sflag [#allocation4], 1
    %1341 = vsyncpa %s1340, 1
    %1342 = vsyncpa [#allocation5], 1
    %s1343 = scalar_lea.sflag [#allocation5], 1
    %1344 = vsyncpa %s1343, 1

</llo_original>
